<compile_context>
chip_gen: v6e
topology: v6e:2x2x1
jax: 0.10.0
libtpu: 0.0.40
codegen_flags: <defaults>
</compile_context>

<pallas_src>
import jax
import jax.numpy as jnp
from jax.experimental import pallas as pl
from jax.experimental.pallas import tpu as pltpu


# ----------------------------------------------------------------------------
# Fused kernel — one grid step per batch element ("parallel" over batch).
#   conv-as-matmul (bf16 in / f32 acc on MXU) + bias + ReLU
#   + global average pool over H*W (AdaptiveAvgPool2d(1))
#   + last_linear (C_feat -> 1) as VPU multiply + lane reduce
# The (HW, C_feat) activation stays in VMEM / vregs only.
# ----------------------------------------------------------------------------
def fused_kernel(p_ref, w_ref, b_ref, wl_ref, bl_ref, feat_ref, logit_ref):
    # p_ref  : (HW, CKK)     bf16  im2col patches of one image
    # w_ref  : (CKK, C_feat) bf16  conv weight
    # b_ref  : (1, C_feat)   f32   conv bias
    # wl_ref : (1, C_feat)   f32   last_linear weight row
    # bl_ref : (1, 1)        f32   last_linear bias (SMEM scalar)
    # feat_ref : (1, C_feat) f32   pooled feature (per batch element)
    # logit_ref: (1, 1)      f32   logit          (per batch element)
    y = jnp.dot(p_ref[...], w_ref[...], preferred_element_type=jnp.float32)
    y = jnp.maximum(y + b_ref[...], 0.0)                     # (HW, C_feat) f32

    inv_hw = jnp.float32(1.0 / y.shape[0])                   # static constant
    feat = jnp.sum(y, axis=0, keepdims=True) * inv_hw        # (1, C_feat) avg pool
    feat_ref[...] = feat

    # Linear(C_feat -> 1): elementwise multiply + cross-lane reduce (VPU/XLU)
    # instead of a maximally-masked width-1 MXU matmul.
    logit_ref[...] = (
        jnp.sum(feat * wl_ref[...], axis=-1, keepdims=True) + bl_ref[0, 0]
    )


def _im2col_3x3_same(x):
    """x: (N, C, H, W) float32 -> patches (N, H*W, C*9)."""
    n, c, h, w = x.shape
    xp = jnp.pad(x, ((0, 0), (0, 0), (1, 1), (1, 1)))
    cols = []
    for kh in range(3):
        for kw in range(3):
            cols.append(xp[:, :, kh:kh + h, kw:kw + w])       # (N, C, H, W)
    p = jnp.stack(cols, axis=2)                               # (N, C, 9, H, W)
    p = p.transpose(0, 3, 4, 1, 2)                            # (N, H, W, C, 9)
    return p.reshape(n, h * w, c * 9)


def get_model_forward(x, params):
    """Pallas implementation of get_model.forward.  x: (N, C, H, W) f32."""
    n, c, h, w = x.shape
    hw = h * w
    ckk = c * 9
    c_feat = params["conv_w"].shape[0]

    # --- plain-JAX glue: im2col + operand preparation ------------------------
    patches = _im2col_3x3_same(x.astype(jnp.float32)).astype(jnp.bfloat16)
    w_conv = params["conv_w"].reshape(c_feat, ckk).T.astype(jnp.bfloat16)  # (CKK, C_feat)
    b_conv = params["conv_b"].reshape(1, c_feat).astype(jnp.float32)       # (1, C_feat)
    w_lin = params["lin_w"].reshape(1, c_feat).astype(jnp.float32)         # (1, C_feat)
    b_lin = params["lin_b"].reshape(1, 1).astype(jnp.float32)              # (1, 1) -> SMEM

    flops = 2 * n * hw * ckk * c_feat + 3 * n * hw * c_feat + 2 * n * c_feat
    bytes_accessed = (
        patches.size * 2 + w_conv.size * 2
        + (b_conv.size + w_lin.size + b_lin.size) * 4
        + n * c_feat * 4 + n * 4
    )

    # --- single fused Pallas kernel ------------------------------------------
    feature3, logit3 = pl.pallas_call(
        fused_kernel,
        out_shape=(
            jax.ShapeDtypeStruct((n, 1, c_feat), jnp.float32),
            jax.ShapeDtypeStruct((n, 1, 1), jnp.float32),
        ),
        grid=(n,),
        in_specs=[
            pl.BlockSpec((pl.Squeezed(), hw, ckk), lambda i: (i, 0, 0)),
            pl.BlockSpec((ckk, c_feat), lambda i: (0, 0)),
            pl.BlockSpec((1, c_feat), lambda i: (0, 0)),
            pl.BlockSpec((1, c_feat), lambda i: (0, 0)),
            pl.BlockSpec(memory_space=pltpu.MemorySpace.SMEM),   # (1,1) scalar bias
        ],
        out_specs=(
            pl.BlockSpec((pl.Squeezed(), 1, c_feat), lambda i: (i, 0, 0)),
            pl.BlockSpec((pl.Squeezed(), 1, 1), lambda i: (i, 0, 0)),
        ),
        compiler_params=pltpu.CompilerParams(
            dimension_semantics=("parallel",),
            vmem_limit_bytes=32 * 1024 * 1024,
        ),
        cost_estimate=pl.CostEstimate(
            flops=flops, transcendentals=0, bytes_accessed=bytes_accessed,
        ),
    )(patches, w_conv, b_conv, w_lin, b_lin)

    feature = feature3.reshape(n, c_feat)
    logit = logit3.reshape(n, 1)
    return feature, logit


def init_params(key, c_in=4, c_feat=32):
    k1, k2, k3, k4 = jax.random.split(key, 4)
    return {
        # backbone stand-in conv: (C_feat, C_in, 3, 3) — PyTorch conv weight layout
        "conv_w": 0.1 * jax.random.normal(k1, (c_feat, c_in, 3, 3), jnp.float32),
        "conv_b": 0.01 * jax.random.normal(k2, (c_feat,), jnp.float32),
        # last_linear: nn.Linear(in_features=c_feat, out_features=1)
        "lin_w": 0.1 * jax.random.normal(k3, (1, c_feat), jnp.float32),
        "lin_b": 0.01 * jax.random.normal(k4, (1,), jnp.float32),
    }


if __name__ == "__main__":
    key = jax.random.PRNGKey(0)
    kx, kp = jax.random.split(key)

    N, C, H, W = 2, 4, 16, 16
    x = jax.random.normal(kx, (N, C, H, W), jnp.float32)
    params = init_params(kp, c_in=C, c_feat=32)

    feature, logit = jax.jit(get_model_forward)(x, params)
    jax.block_until_ready((feature, logit))

    assert feature.shape == (N, 32)
    assert logit.shape == (N, 1)
    print("KERNEL_OK")
</pallas_src>

<mosaic_0001>
module attributes {stable_mosaic.version = 11 : i64} {
  func.func @fused_kernel(%arg0: i32, %arg1: memref<1x256x36xbf16, #tpu.memory_space<vmem>>, %arg2: memref<36x32xbf16, #tpu.memory_space<vmem>>, %arg3: memref<1x32xf32, #tpu.memory_space<vmem>>, %arg4: memref<1x32xf32, #tpu.memory_space<vmem>>, %arg5: memref<1x1xf32, #tpu.memory_space<smem>>, %arg6: memref<1x1x32xf32, #tpu.memory_space<vmem>>, %arg7: memref<1x1x1xf32, #tpu.memory_space<vmem>>) attributes {dimension_semantics = [#tpu.dimension_semantics<parallel>], iteration_bounds = array<i64: 2>, scalar_prefetch = 0 : i64, scratch_operands = 0 : i64, tpu.core_type = #tpu.core_type<tc>, window_params = [{transform_indices = @transform_0, window_bounds = array<i64: 1, 256, 36>}, {pipeline_mode = #tpu.pipeline_mode<synchronous>, transform_indices = @transform_1, window_bounds = array<i64: 36, 32>}, {pipeline_mode = #tpu.pipeline_mode<synchronous>, transform_indices = @transform_2, window_bounds = array<i64: 1, 32>}, {pipeline_mode = #tpu.pipeline_mode<synchronous>, transform_indices = @transform_3, window_bounds = array<i64: 1, 32>}, {transform_indices = @transform_4, window_bounds = array<i64: 1, 1>}, {transform_indices = @transform_5, window_bounds = array<i64: 1, 1, 32>}, {transform_indices = @transform_6, window_bounds = array<i64: 1, 1, 1>}]} {
    %c0 = arith.constant 0 : index
    %c0_0 = arith.constant 0 : index
    %c0_1 = arith.constant 0 : index
    %0 = vector.load %arg1[%c0, %c0_0, %c0_1] : memref<1x256x36xbf16, #tpu.memory_space<vmem>>, vector<1x256x36xbf16>
    %1 = vector.shape_cast %0 : vector<1x256x36xbf16> to vector<256x36xbf16>
    %c0_2 = arith.constant 0 : index
    %c0_3 = arith.constant 0 : index
    %2 = vector.load %arg2[%c0_2, %c0_3] : memref<36x32xbf16, #tpu.memory_space<vmem>>, vector<36x32xbf16>
    %cst = arith.constant dense<0.000000e+00> : vector<256x32xf32>
    %3 = tpu.matmul %1, %2, %cst {dimension_numbers = #tpu.dot_dimension_numbers<[1], [0], [0], [1], [0, 0, 1, 1], [], []>} : vector<256x36xbf16>, vector<36x32xbf16>, vector<256x32xf32> -> vector<256x32xf32>
    %c0_4 = arith.constant 0 : index
    %c0_5 = arith.constant 0 : index
    %4 = vector.load %arg3[%c0_4, %c0_5] : memref<1x32xf32, #tpu.memory_space<vmem>>, vector<1x32xf32>
    %5 = vector.broadcast %4 : vector<1x32xf32> to vector<256x32xf32>
    %6 = arith.addf %3, %5 : vector<256x32xf32>
    %cst_6 = arith.constant 0.000000e+00 : f32
    %7 = vector.broadcast %cst_6 : f32 to vector<256x32xf32>
    %8 = arith.maximumf %6, %7 : vector<256x32xf32>
    %cst_7 = arith.constant dense<0.000000e+00> : vector<32xf32>
    %9 = vector.multi_reduction <add>, %8, %cst_7 [0] : vector<256x32xf32> to vector<32xf32>
    %10 = vector.shape_cast %9 : vector<32xf32> to vector<1x32xf32>
    %cst_8 = arith.constant 3.906250e-03 : f32
    %11 = vector.broadcast %cst_8 : f32 to vector<1x32xf32>
    %12 = arith.mulf %10, %11 : vector<1x32xf32>
    %c0_9 = arith.constant 0 : index
    %c0_10 = arith.constant 0 : index
    %c0_11 = arith.constant 0 : index
    %13 = vector.load %arg6[%c0_9, %c0_10, %c0_11] : memref<1x1x32xf32, #tpu.memory_space<vmem>>, vector<1x1x32xf32>
    %14 = vector.shape_cast %13 : vector<1x1x32xf32> to vector<1x32xf32>
    %15 = vector.shape_cast %12 : vector<1x32xf32> to vector<1x1x32xf32>
    tpu.vector_store %arg6[%c0_9, %c0_10, %c0_11], %15 {strides = array<i32>} : memref<1x1x32xf32, #tpu.memory_space<vmem>>, vector<1x1x32xf32>,
    %c0_12 = arith.constant 0 : index
    %c0_13 = arith.constant 0 : index
    %16 = vector.load %arg4[%c0_12, %c0_13] : memref<1x32xf32, #tpu.memory_space<vmem>>, vector<1x32xf32>
    %17 = arith.mulf %12, %16 : vector<1x32xf32>
    %cst_14 = arith.constant dense<0.000000e+00> : vector<1xf32>
    %18 = vector.multi_reduction <add>, %17, %cst_14 [1] : vector<1x32xf32> to vector<1xf32>
    %19 = vector.shape_cast %18 : vector<1xf32> to vector<1x1xf32>
    %c0_15 = arith.constant 0 : index
    %c0_16 = arith.constant 0 : index
    %20 = memref.load %arg5[%c0_15, %c0_16] : memref<1x1xf32, #tpu.memory_space<smem>>
    %21 = vector.broadcast %20 : f32 to vector<1x1xf32>
    %22 = arith.addf %19, %21 : vector<1x1xf32>
    %c0_17 = arith.constant 0 : index
    %c0_18 = arith.constant 0 : index
    %c0_19 = arith.constant 0 : index
    %23 = vector.load %arg7[%c0_17, %c0_18, %c0_19] : memref<1x1x1xf32, #tpu.memory_space<vmem>>, vector<1x1x1xf32>
    %24 = vector.shape_cast %23 : vector<1x1x1xf32> to vector<1x1xf32>
    %25 = vector.shape_cast %22 : vector<1x1xf32> to vector<1x1x1xf32>
    tpu.vector_store %arg7[%c0_17, %c0_18, %c0_19], %25 {strides = array<i32>} : memref<1x1x1xf32, #tpu.memory_space<vmem>>, vector<1x1x1xf32>,
    return
  }
  func.func @transform_0(%arg0: i32) -> (i32, i32, i32) {
    %c0_i32 = arith.constant 0 : i32
    %c0_i32_0 = arith.constant 0 : i32
    %c0_i32_1 = arith.constant 0 : i32
    return %arg0, %c0_i32, %c0_i32_0 : i32, i32, i32
  }
  func.func @transform_1(%arg0: i32) -> (i32, i32) {
    %c0_i32 = arith.constant 0 : i32
    %c0_i32_0 = arith.constant 0 : i32
    %c0_i32_1 = arith.constant 0 : i32
    return %c0_i32, %c0_i32_0 : i32, i32
  }
  func.func @transform_2(%arg0: i32) -> (i32, i32) {
    %c0_i32 = arith.constant 0 : i32
    %c0_i32_0 = arith.constant 0 : i32
    %c0_i32_1 = arith.constant 0 : i32
    return %c0_i32, %c0_i32_0 : i32, i32
  }
  func.func @transform_3(%arg0: i32) -> (i32, i32) {
    %c0_i32 = arith.constant 0 : i32
    %c0_i32_0 = arith.constant 0 : i32
    %c0_i32_1 = arith.constant 0 : i32
    return %c0_i32, %c0_i32_0 : i32, i32
  }
  func.func @transform_4(%arg0: i32) -> (i32, i32) {
    %c0_i32 = arith.constant 0 : i32
    %c0_i32_0 = arith.constant 0 : i32
    %c0_i32_1 = arith.constant 0 : i32
    return %c0_i32, %c0_i32_0 : i32, i32
  }
  func.func @transform_5(%arg0: i32) -> (i32, i32, i32) {
    %c0_i32 = arith.constant 0 : i32
    %c0_i32_0 = arith.constant 0 : i32
    %c0_i32_1 = arith.constant 0 : i32
    return %arg0, %c0_i32, %c0_i32_0 : i32, i32, i32
  }
  func.func @transform_6(%arg0: i32) -> (i32, i32, i32) {
    %c0_i32 = arith.constant 0 : i32
    %c0_i32_0 = arith.constant 0 : i32
    %c0_i32_1 = arith.constant 0 : i32
    return %arg0, %c0_i32, %c0_i32_0 : i32, i32, i32
  }
}

</mosaic_0001>

<llo_original>
// kernel: get_model_forward.1
$region0: #{get_model_forward.1}
  #allocation0 [shape = 'u32[]', space=smem, size = 0x4, offset = 0x4, fixed_abs, tag = 'smem constant byte address 0x4 - core index']
  #allocation1 [shape = 'u32[144,128]{1,0:T(1,128)}', space=vmem, size = 0x12000, scoped, tag = 'internal scratch']
  #allocation2 [shape = 'f32[1,1]{1,0:T(1,128)S(6)}', space=smem, size = 0x200, scoped, tag = 'scoped memory for get_model_forward.1']
  %s0 = inlined_call_operand.vmem [shape: bf16[2,256,36], index: 0, kind: input, shape index: {}]
  %s1 = inlined_call_operand.vmem [shape: bf16[36,32], index: 1, kind: input, shape index: {}]
  %s2 = inlined_call_operand.vmem [shape: f32[1,32], index: 2, kind: input, shape index: {}]
  %s3 = inlined_call_operand.vmem [shape: f32[1,32], index: 3, kind: input, shape index: {}]
  %s4 = inlined_call_operand.<no memory space> [shape: f32[1,1], index: 4, kind: input, shape index: {}]
  %s5 = inlined_call_operand.hbm [shape: f32[2,1,32], index: 5, kind: output, shape index: {0}]
  %s6 = inlined_call_operand.vmem [shape: f32[2,1,1], index: 6, kind: output, shape index: {1}]
  %7 = xla_tuple %s5, %s6
  %s8 = sld [smem:[#allocation0]]
  $region61: #{get_model_forward.1} parent=0
    _
  %s10 = ssub.s32 1, %s8
  %s11 = scalar_select 0, %s10, %s8
  %12 = sst [smem:[#allocation2]] %s4
  $region1: #{get_model_forward.1} parent=0
    #allocation3 [shape = 'u8[1024]{0}', space=vmem, size = 0x400, scoped, tag = 'output window, operand 0']
    #allocation4 [shape = 's32[2]{0}', space=sflag, size = 0x8, scoped, tag = 'scoped memory for get_model_forward.1']
    %13 = vsyncpa [#allocation4], 0
    %s14 = scalar_lea.sflag [#allocation4], 1
    %15 = vsyncpa %s14, 0
    loop: start=0, step=1, limit=4
    $region2: #{get_model_forward.1} parent=1 // loop_pre_header
      _
    $region3: #{get_model_forward.1} parent=1 // loop_header
      %s17 = sphi 0, %s21
      %p18 = scmp.ge.s32.totalorder %s17, 4
      %s27 = sphi 0, %s29
      %s30 = sphi 0, %s27
      %s31 = sphi 0, %s30
      %s47 = sphi 0, %s31
      %s51 = sphi 0, %s51
      %s53 = sphi 0, %s51
      %s54 = sphi 0, %s53
      %s68 = sphi 0, %s54
      %s72 = sphi 0, %s72
      %s74 = sphi 0, %s72
      %s75 = sphi 0, %s74
      %s89 = sphi 0, %s75
      %s93 = sphi 0, %s93
      %s95 = sphi 0, %s93
      %s96 = sphi 0, %s95
      %s110 = sphi 0, %s96
      %s114 = sphi 0, %s114
      %s116 = sphi 0, %s114
      %s117 = sphi 0, %s116
      %s131 = sphi 0, %s117
      %s137 = sphi 0, %s139
      %s140 = sphi 0, %s137
      %s141 = sphi 0, %s140
      %s157 = sphi 0, %s141
      %s163 = sphi 0, %s165
      %s166 = sphi 0, %s163
      %s167 = sphi 0, %s166
      %s183 = sphi 0, %s167
    $region4: #{get_model_forward.1} parent=1 // loop_header_branch
      %20 = sbr.rel (%p18) target = $region8
    $region5: #{get_model_forward.1} parent=1 // loop_body
      %s22 = ssub.s32 %s17, 1
      %s23 = ssub.s32 %s17, 2
      %s24 = sadd.s32 %s17, 1
      %s25 = ssub.s32 %s17, %s24
      %p26 = scmp.eq.s32.totalorder %s25, 0
      %s28 = sadd.s32 %s27, 1
      %s29 = scalar_select %p26, %s27, %s28
      %p32 = pneg %p26
      %p33 = scmp.eq.s32.totalorder %s17, 1
      %p34 = por %p32, %p33
      %p35 = scmp.ne.s32.totalorder %s27, %s30
      %p36 = scmp.eq.s32.totalorder %s17, 0
      %p37 = por %p35, %p36
      %p38 = scmp.ne.s32.totalorder %s27, %s30
      %p39 = scmp.eq.s32.totalorder %s22, 1
      %p40 = por %p38, %p39
      %p41 = scmp.ne.s32.totalorder %s30, %s31
      %p42 = scmp.eq.s32.totalorder %s22, 0
      %p43 = por %p41, %p42
      %p44 = scmp.ne.s32.totalorder %s30, %s31
      %p45 = scmp.eq.s32.totalorder %s23, 1
      %p46 = por %p44, %p45
      %p48 = scmp.ne.s32.totalorder %s31, %s47
      %p49 = scmp.eq.s32.totalorder %s23, 0
      %p50 = por %p48, %p49
      %s52 = sadd.s32 %s51, 1
      %p55 = scmp.eq.s32.totalorder %s17, 1
      %p56 = scmp.ne.s32.totalorder %s51, %s53
      %p57 = scmp.eq.s32.totalorder %s17, 0
      %p58 = por %p56, %p57
      %p59 = scmp.ne.s32.totalorder %s51, %s53
      %p60 = scmp.eq.s32.totalorder %s22, 1
      %p61 = por %p59, %p60
      %p62 = scmp.ne.s32.totalorder %s53, %s54
      %p63 = scmp.eq.s32.totalorder %s22, 0
      %p64 = por %p62, %p63
      %p65 = scmp.ne.s32.totalorder %s53, %s54
      %p66 = scmp.eq.s32.totalorder %s23, 1
      %p67 = por %p65, %p66
      %p69 = scmp.ne.s32.totalorder %s54, %s68
      %p70 = scmp.eq.s32.totalorder %s23, 0
      %p71 = por %p69, %p70
      %s73 = sadd.s32 %s72, 1
      %p76 = scmp.eq.s32.totalorder %s17, 1
      %p77 = scmp.ne.s32.totalorder %s72, %s74
      %p78 = scmp.eq.s32.totalorder %s17, 0
      %p79 = por %p77, %p78
      %p80 = scmp.ne.s32.totalorder %s72, %s74
      %p81 = scmp.eq.s32.totalorder %s22, 1
      %p82 = por %p80, %p81
      %p83 = scmp.ne.s32.totalorder %s74, %s75
      %p84 = scmp.eq.s32.totalorder %s22, 0
      %p85 = por %p83, %p84
      %p86 = scmp.ne.s32.totalorder %s74, %s75
      %p87 = scmp.eq.s32.totalorder %s23, 1
      %p88 = por %p86, %p87
      %p90 = scmp.ne.s32.totalorder %s75, %s89
      %p91 = scmp.eq.s32.totalorder %s23, 0
      %p92 = por %p90, %p91
      %s94 = sadd.s32 %s93, 1
      %p97 = scmp.eq.s32.totalorder %s17, 1
      %p98 = scmp.ne.s32.totalorder %s93, %s95
      %p99 = scmp.eq.s32.totalorder %s17, 0
      %p100 = por %p98, %p99
      %p101 = scmp.ne.s32.totalorder %s93, %s95
      %p102 = scmp.eq.s32.totalorder %s22, 1
      %p103 = por %p101, %p102
      %p104 = scmp.ne.s32.totalorder %s95, %s96
      %p105 = scmp.eq.s32.totalorder %s22, 0
      %p106 = por %p104, %p105
      %p107 = scmp.ne.s32.totalorder %s95, %s96
      %p108 = scmp.eq.s32.totalorder %s23, 1
      %p109 = por %p107, %p108
      %p111 = scmp.ne.s32.totalorder %s96, %s110
      %p112 = scmp.eq.s32.totalorder %s23, 0
      %p113 = por %p111, %p112
      %s115 = sadd.s32 %s114, 1
      %p118 = scmp.eq.s32.totalorder %s17, 1
      %p119 = scmp.ne.s32.totalorder %s114, %s116
      %p120 = scmp.eq.s32.totalorder %s17, 0
      %p121 = por %p119, %p120
      %p122 = scmp.ne.s32.totalorder %s114, %s116
      %p123 = scmp.eq.s32.totalorder %s22, 1
      %p124 = por %p122, %p123
      %p125 = scmp.ne.s32.totalorder %s116, %s117
      %p126 = scmp.eq.s32.totalorder %s22, 0
      %p127 = por %p125, %p126
      %p128 = scmp.ne.s32.totalorder %s116, %s117
      %p129 = scmp.eq.s32.totalorder %s23, 1
      %p130 = por %p128, %p129
      %p132 = scmp.ne.s32.totalorder %s117, %s131
      %p133 = scmp.eq.s32.totalorder %s23, 0
      %p134 = por %p132, %p133
      %s135 = ssub.s32 %s17, %s24
      %p136 = scmp.eq.s32.totalorder %s135, 0
      %s138 = sadd.s32 %s137, 1
      %s139 = scalar_select %p136, %s137, %s138
      %p142 = pneg %p136
      %p143 = scmp.eq.s32.totalorder %s17, 1
      %p144 = por %p142, %p143
      %p145 = scmp.ne.s32.totalorder %s137, %s140
      %p146 = scmp.eq.s32.totalorder %s17, 0
      %p147 = por %p145, %p146
      %p148 = scmp.ne.s32.totalorder %s137, %s140
      %p149 = scmp.eq.s32.totalorder %s22, 1
      %p150 = por %p148, %p149
      %p151 = scmp.ne.s32.totalorder %s140, %s141
      %p152 = scmp.eq.s32.totalorder %s22, 0
      %p153 = por %p151, %p152
      %p154 = scmp.ne.s32.totalorder %s140, %s141
      %p155 = scmp.eq.s32.totalorder %s23, 1
      %p156 = por %p154, %p155
      %p158 = scmp.ne.s32.totalorder %s141, %s157
      %p159 = scmp.eq.s32.totalorder %s23, 0
      %p160 = por %p158, %p159
      %s161 = ssub.s32 %s17, %s24
      %p162 = scmp.eq.s32.totalorder %s161, 0
      %s164 = sadd.s32 %s163, 1
      %s165 = scalar_select %p162, %s163, %s164
      %p168 = pneg %p162
      %p169 = scmp.eq.s32.totalorder %s17, 1
      %p170 = por %p168, %p169
      %p171 = scmp.ne.s32.totalorder %s163, %s166
      %p172 = scmp.eq.s32.totalorder %s17, 0
      %p173 = por %p171, %p172
      %p174 = scmp.ne.s32.totalorder %s163, %s166
      %p175 = scmp.eq.s32.totalorder %s22, 1
      %p176 = por %p174, %p175
      %p177 = scmp.ne.s32.totalorder %s166, %s167
      %p178 = scmp.eq.s32.totalorder %s22, 0
      %p179 = por %p177, %p178
      %p180 = scmp.ne.s32.totalorder %s166, %s167
      %p181 = scmp.eq.s32.totalorder %s23, 1
      %p182 = por %p180, %p181
      %p184 = scmp.ne.s32.totalorder %s167, %s183
      %p185 = scmp.eq.s32.totalorder %s23, 0
      %p186 = por %p184, %p185
      %p187 = scmp.le.s32.totalorder 1, %s17
      %p188 = scmp.lt.s32.totalorder %s17, 3
      %p189 = pnand %p187, %p188
      %p190 = pneg %p189
      // Predicated region
      $region9: #{get_model_forward.1} parent=5 // pred_check
        _
      $region10: #{get_model_forward.1} parent=5 // pred_check_branch
        %192 = sbr.rel (%p189) target = $region12
      $region11: #{get_model_forward.1} parent=5 // pred_region
        %s193 = ssub.s32 %s17, 1
        // Predicated region
        $region13: #{get_model_forward.1} parent=11 // pred_check
          %p194 = pneg %p64
        $region14: #{get_model_forward.1} parent=11 // pred_check_branch
          %196 = sbr.rel (%p194) target = $region16
        $region15: #{get_model_forward.1} parent=11 // pred_region
          _
        $region16: #{get_model_forward.1} parent=11 // pred_fallthru
          _
        // Predicated region
        $region17: #{get_model_forward.1} parent=11 // pred_check
          %p197 = pneg %p85
        $region18: #{get_model_forward.1} parent=11 // pred_check_branch
          %199 = sbr.rel (%p197) target = $region20
        $region19: #{get_model_forward.1} parent=11 // pred_region
          _
        $region20: #{get_model_forward.1} parent=11 // pred_fallthru
          _
        // Predicated region
        $region21: #{get_model_forward.1} parent=11 // pred_check
          %p200 = pneg %p106
        $region22: #{get_model_forward.1} parent=11 // pred_check_branch
          %202 = sbr.rel (%p200) target = $region24
        $region23: #{get_model_forward.1} parent=11 // pred_region
          _
        $region24: #{get_model_forward.1} parent=11 // pred_fallthru
          _
        // Predicated region
        $region25: #{get_model_forward.1} parent=11 // pred_check
          %p203 = pneg %p127
        $region26: #{get_model_forward.1} parent=11 // pred_check_branch
          %205 = sbr.rel (%p203) target = $region28
        $region27: #{get_model_forward.1} parent=11 // pred_region
          _
        $region28: #{get_model_forward.1} parent=11 // pred_fallthru
          _
      $region12: #{get_model_forward.1} parent=5 // pred_fallthru
        _
      %p206 = scmp.lt.s32.totalorder %s17, 2
      // Predicated region
      $region29: #{get_model_forward.1} parent=5 // pred_check
        %p207 = pneg %p206
      $region30: #{get_model_forward.1} parent=5 // pred_check_branch
        %209 = sbr.rel (%p207) target = $region32
      $region31: #{get_model_forward.1} parent=5 // pred_region
        // Predicated region
        $region33: #{get_model_forward.1} parent=31 // pred_check
          %p210 = pneg %p37
        $region34: #{get_model_forward.1} parent=31 // pred_check_branch
          %212 = sbr.rel (%p210) target = $region36
        $region35: #{get_model_forward.1} parent=31 // pred_region
          %p213 = scmp.lt.s32.totalorder %s17, 1
          %s214 = scalar_select %p213, %s17, 1
          %s215 = smul.addr %s214, 32
          %s216 = smul.addr %s215, 4
          %s217 = scalar_lea.vmem %s0, %s216
        $region36: #{get_model_forward.1} parent=31 // pred_fallthru
          _
      $region32: #{get_model_forward.1} parent=5 // pred_fallthru
        _
      %p218 = scmp.le.s32.totalorder 1, %s17
      %p219 = scmp.lt.s32.totalorder %s17, 3
      %p220 = pnand %p218, %p219
      %p221 = pneg %p220
      // Predicated region
      $region37: #{get_model_forward.1} parent=5 // pred_check
        _
      $region38: #{get_model_forward.1} parent=5 // pred_check_branch
        %223 = sbr.rel (%p220) target = $region40
      $region39: #{get_model_forward.1} parent=5 // pred_region
        %s224 = ssub.s32 %s17, 1
        %p225 = scmp.lt.s32.totalorder %s22, 1
        %s226 = scalar_select %p225, %s22, 1
        %s227 = smul.addr %s226, 32
        %s228 = smul.addr %s227, 4
        %s229 = scalar_lea.vmem %s0, %s228
        %p230 = pneg %p43
        %p231 = pneg %p40
        %p232 = pneg %p64
        %p233 = pneg %p61
        %p234 = pneg %p85
        %p235 = pneg %p82
        %p236 = pneg %p106
        %p237 = pneg %p103
        %p238 = pneg %p127
        %p239 = pneg %p124
        %p240 = pneg %p153
        %p241 = pneg %p150
        %s242 = sand.u32 %s140, 1
        %s243 = scalar_lea.sflag [#allocation4], %s242
        %s244 = sand.u32 %s140, 1
        %s245 = scalar_lea.vmem [#allocation3], %s244
        %p246 = pneg %p179
        %p247 = pneg %p176
        %p248 = scmp.lt.s32.totalorder %s22, 1
        %s249 = scalar_select %p248, %s22, 1
        %s250 = scalar_lea.vmem %s6, %s249
        %p251 = scmp.lt.s32.totalorder %s22, 1
        %s252 = scalar_select %p251, %s22, 1
        %s253 = smul.addr %s252, 32
        %s254 = smul.addr %s253, 4
        %s255 = scalar_lea.vmem %s0, %s254
        %p256 = scmp.lt.s32.totalorder %s22, 1
        %s257 = scalar_select %p256, %s22, 1
        %s258 = scalar_lea.vmem %s6, %s257
        %v260 = vld [vmem:[%s255] sm:$0xf]
        %v261 = vld [vmem:[%s255 + $0x4] sm:$0xf]
        %v262 = vld [vmem:[%s255 + $0x8] sm:$0xf]
        %v263 = vld [vmem:[%s255 + $0xc] sm:$0xf]
        %v264 = vld [vmem:[%s255 + $0x10] sm:$0xf]
        %v265 = vld [vmem:[%s255 + $0x14] sm:$0xf]
        %v266 = vld [vmem:[%s255 + $0x18] sm:$0xf]
        %v267 = vld [vmem:[%s255 + $0x1c] sm:$0xf]
        %v268 = vld [vmem:[%s255 + $0x20] sm:$0xf]
        %v269 = vld [vmem:[%s255 + $0x24] sm:$0xf]
        %v270 = vld [vmem:[%s255 + $0x28] sm:$0xf]
        %v271 = vld [vmem:[%s255 + $0x2c] sm:$0xf]
        %v272 = vld [vmem:[%s255 + $0x30] sm:$0xf]
        %v273 = vld [vmem:[%s255 + $0x34] sm:$0xf]
        %v274 = vld [vmem:[%s255 + $0x38] sm:$0xf]
        %v275 = vld [vmem:[%s255 + $0x3c] sm:$0xf]
        %v276 = vld [vmem:[%s255 + $0x40] sm:$0xf]
        %v277 = vld [vmem:[%s255 + $0x44] sm:$0xf]
        %v278 = vld [vmem:[%s255 + $0x48] sm:$0xf]
        %v279 = vld [vmem:[%s255 + $0x4c] sm:$0xf]
        %v280 = vld [vmem:[%s255 + $0x50] sm:$0xf]
        %v281 = vld [vmem:[%s255 + $0x54] sm:$0xf]
        %v282 = vld [vmem:[%s255 + $0x58] sm:$0xf]
        %v283 = vld [vmem:[%s255 + $0x5c] sm:$0xf]
        %v284 = vld [vmem:[%s255 + $0x60] sm:$0xf]
        %v285 = vld [vmem:[%s255 + $0x64] sm:$0xf]
        %v286 = vld [vmem:[%s255 + $0x68] sm:$0xf]
        %v287 = vld [vmem:[%s255 + $0x6c] sm:$0xf]
        %v288 = vld [vmem:[%s255 + $0x70] sm:$0xf]
        %v289 = vld [vmem:[%s255 + $0x74] sm:$0xf]
        %v290 = vld [vmem:[%s255 + $0x78] sm:$0xf]
        %v291 = vld [vmem:[%s255 + $0x7c] sm:$0xf]
        %v292 = vld [vmem:[%s1] sm:$0xf]
        %v293 = vld [vmem:[%s1 + $0x4] sm:$0xf]
        %v294 = vld [vmem:[%s1 + $0x8] sm:$0xf]
        %v295 = vld [vmem:[%s1 + $0xc] sm:$0xf]
        %v296 = vld [vmem:[%s1 + $0x10] sm:$0x3]
        %v297 = vld [vmem:[%s2] sm:$0x1]
        %v299 = vlaneseq
        %v300 = vshrl.u32 %v299, 7
        %v301 = vsub.s32 0, %v300
        %v302 = vrot.slane %v297, %v301
        %v336 = vunpack.c.l.b16 %v260
        %v337 = vunpack.c.l.b16 %v261
        %v338 = vunpack.c.l.b16 %v262
        %v339 = vunpack.c.l.b16 %v263
        %v340 = vunpack.c.l.b16 %v264
        %v341 = vunpack.c.l.b16 %v265
        %v342 = vunpack.c.l.b16 %v266
        %v343 = vunpack.c.l.b16 %v267
        %v344 = vunpack.c.l.b16 %v268
        %v345 = vunpack.c.l.b16 %v269
        %v346 = vunpack.c.l.b16 %v270
        %v347 = vunpack.c.l.b16 %v271
        %v348 = vunpack.c.l.b16 %v272
        %v349 = vunpack.c.l.b16 %v273
        %v350 = vunpack.c.l.b16 %v274
        %v351 = vunpack.c.l.b16 %v275
        %v352 = vunpack.c.l.b16 %v276
        %v353 = vunpack.c.l.b16 %v277
        %v354 = vunpack.c.l.b16 %v278
        %v355 = vunpack.c.l.b16 %v279
        %v356 = vunpack.c.l.b16 %v280
        %v357 = vunpack.c.l.b16 %v281
        %v358 = vunpack.c.l.b16 %v282
        %v359 = vunpack.c.l.b16 %v283
        %v360 = vunpack.c.l.b16 %v284
        %v361 = vunpack.c.l.b16 %v285
        %v362 = vunpack.c.l.b16 %v286
        %v363 = vunpack.c.l.b16 %v287
        %v364 = vunpack.c.l.b16 %v288
        %v365 = vunpack.c.l.b16 %v289
        %v366 = vunpack.c.l.b16 %v290
        %v367 = vunpack.c.l.b16 %v291
        %v368 = vpack.c.b16 %v337, %v336
        %v369 = vpack.c.b16 %v339, %v338
        %v370 = vpack.c.b16 %v341, %v340
        %v371 = vpack.c.b16 %v343, %v342
        %v372 = vpack.c.b16 %v345, %v344
        %v373 = vpack.c.b16 %v347, %v346
        %v374 = vpack.c.b16 %v349, %v348
        %v375 = vpack.c.b16 %v351, %v350
        %v376 = vpack.c.b16 %v353, %v352
        %v377 = vpack.c.b16 %v355, %v354
        %v378 = vpack.c.b16 %v357, %v356
        %v379 = vpack.c.b16 %v359, %v358
        %v380 = vpack.c.b16 %v361, %v360
        %v381 = vpack.c.b16 %v363, %v362
        %v382 = vpack.c.b16 %v365, %v364
        %v383 = vpack.c.b16 %v367, %v366
        %v389 = vunpack.c.l.b16 %v292
        %v390 = vunpack.c.l.b16 %v293
        %v391 = vunpack.c.l.b16 %v294
        %v392 = vunpack.c.l.b16 %v295
        %v393 = vunpack.c.l.b16 %v296
        %v394 = vpack.c.b16 %v390, %v389
        %v395 = vpack.c.b16 %v392, %v391
        %v396 = vpack.c.b16 %v393, %v393
        %vm399 = vcmask 293888
        %v401 = vsel %vm399, %v368, 0
        %v404 = vsel %vm399, %v369, 0
        %v407 = vsel %vm399, %v370, 0
        %v410 = vsel %vm399, %v371, 0
        %v413 = vsel %vm399, %v372, 0
        %v416 = vsel %vm399, %v373, 0
        %v419 = vsel %vm399, %v374, 0
        %v422 = vsel %vm399, %v375, 0
        %v425 = vsel %vm399, %v376, 0
        %v428 = vsel %vm399, %v377, 0
        %v431 = vsel %vm399, %v378, 0
        %v434 = vsel %vm399, %v379, 0
        %v437 = vsel %vm399, %v380, 0
        %v440 = vsel %vm399, %v381, 0
        %v443 = vsel %vm399, %v382, 0
        %v446 = vsel %vm399, %v383, 0
        %vm448 = vcmask 1041408
        %v450 = vsel %vm448, %v396, 0
        %452 = vmatprep.subr.bf16.mxu0 0
        %453 = vmatpush1.bf16.msra.mxu0 0
        %454 = vmatprep.subr.bf16.mxu0 0
        %455 = vmatpush1.bf16.msra.mxu0 0
        %456 = vmatprep.subr.bf16.mxu0 0
        %457 = vmatpush1.bf16.msra.mxu0 0
        %458 = vmatprep.subr.bf16.mxu0 0
        %459 = vmatpush1.bf16.msra.mxu0 0
        %460 = vmatprep.subr.bf16.mxu0 0
        %461 = vmatpush1.bf16.msra.mxu0 0
        %462 = vmatprep.subr.bf16.mxu0 0
        %463 = vmatpush1.bf16.msra.mxu0 %v450
        %464 = vmatprep.subr.bf16.mxu0 0
        %465 = vmatpush1.bf16.msra.mxu0 %v395
        %466 = vmatprep.subr.bf16.mxu0 0
        %467 = vmatpush1.bf16.msra.mxu0 %v394
        %468 = vmatprep.subr.bf16.mxu0 0
        %469 = vmatpush2.bf16.msra.mxu0 0
        %470 = vmatprep.subr.bf16.mxu0 0
        %471 = vmatpush2.bf16.msra.mxu0 0
        %472 = vmatprep.subr.bf16.mxu0 0
        %473 = vmatpush2.bf16.msra.mxu0 0
        %474 = vmatprep.subr.bf16.mxu0 0
        %475 = vmatpush2.bf16.msra.mxu0 0
        %476 = vmatprep.subr.bf16.mxu0 0
        %477 = vmatpush2.bf16.msra.mxu0 0
        %478 = vmatprep.subr.bf16.mxu0 0
        %479 = vmatpush2.bf16.msra.mxu0 0
        %480 = vmatprep.subr.bf16.mxu0 0
        %481 = vmatpush2.bf16.msra.mxu0 0
        %482 = vmatprep.subr.bf16.mxu0 0
        %483 = vmatpush2.bf16.msra.mxu0 0
        %484 = vmatprep.mubr.bf16.mxu0 0
        %485 = vmatmul.mubr.bf16.gmra.mxu0 %v401
        %v486 = vpop.f32.mrf.mxu0
        %v487 = vadd.f32 %v302, %v486
        %v488 = vpop.f32.mrf.mxu0
        %v489 = vpop.f32.mrf.mxu0
        %v490 = vadd.f32 %v302, %v489
        %v491 = vpop.f32.mrf.mxu0
        %492 = vmatprep.mubr.bf16.mxu0 0
        %493 = vmatmul.mubr.bf16.gmra.mxu0 %v404
        %v494 = vpop.f32.mrf.mxu0
        %v495 = vadd.f32 %v302, %v494
        %v496 = vpop.f32.mrf.mxu0
        %v497 = vpop.f32.mrf.mxu0
        %v498 = vadd.f32 %v302, %v497
        %v499 = vpop.f32.mrf.mxu0
        %500 = vmatprep.mubr.bf16.mxu0 0
        %501 = vmatmul.mubr.bf16.gmra.mxu0 %v407
        %v502 = vpop.f32.mrf.mxu0
        %v503 = vadd.f32 %v302, %v502
        %v504 = vpop.f32.mrf.mxu0
        %v505 = vpop.f32.mrf.mxu0
        %v506 = vadd.f32 %v302, %v505
        %v507 = vpop.f32.mrf.mxu0
        %508 = vmatprep.mubr.bf16.mxu0 0
        %509 = vmatmul.mubr.bf16.gmra.mxu0 %v410
        %v510 = vpop.f32.mrf.mxu0
        %v511 = vadd.f32 %v302, %v510
        %v512 = vpop.f32.mrf.mxu0
        %v513 = vpop.f32.mrf.mxu0
        %v514 = vadd.f32 %v302, %v513
        %v515 = vpop.f32.mrf.mxu0
        %516 = vmatprep.mubr.bf16.mxu0 0
        %517 = vmatmul.mubr.bf16.gmra.mxu0 %v413
        %v518 = vpop.f32.mrf.mxu0
        %v519 = vadd.f32 %v302, %v518
        %v520 = vpop.f32.mrf.mxu0
        %v521 = vpop.f32.mrf.mxu0
        %v522 = vadd.f32 %v302, %v521
        %v523 = vpop.f32.mrf.mxu0
        %524 = vmatprep.mubr.bf16.mxu0 0
        %525 = vmatmul.mubr.bf16.gmra.mxu0 %v416
        %v526 = vpop.f32.mrf.mxu0
        %v527 = vadd.f32 %v302, %v526
        %v528 = vpop.f32.mrf.mxu0
        %v529 = vpop.f32.mrf.mxu0
        %v530 = vadd.f32 %v302, %v529
        %v531 = vpop.f32.mrf.mxu0
        %532 = vmatprep.mubr.bf16.mxu0 0
        %533 = vmatmul.mubr.bf16.gmra.mxu0 %v419
        %v534 = vpop.f32.mrf.mxu0
        %v535 = vadd.f32 %v302, %v534
        %v536 = vpop.f32.mrf.mxu0
        %v537 = vpop.f32.mrf.mxu0
        %v538 = vadd.f32 %v302, %v537
        %v539 = vpop.f32.mrf.mxu0
        %540 = vmatprep.mubr.bf16.mxu0 0
        %541 = vmatmul.mubr.bf16.gmra.mxu0 %v422
        %v542 = vpop.f32.mrf.mxu0
        %v543 = vadd.f32 %v302, %v542
        %v544 = vpop.f32.mrf.mxu0
        %v545 = vpop.f32.mrf.mxu0
        %v546 = vadd.f32 %v302, %v545
        %v547 = vpop.f32.mrf.mxu0
        %548 = vmatprep.mubr.bf16.mxu0 0
        %549 = vmatmul.mubr.bf16.gmra.mxu0 %v425
        %v550 = vpop.f32.mrf.mxu0
        %v551 = vadd.f32 %v302, %v550
        %v552 = vpop.f32.mrf.mxu0
        %v553 = vpop.f32.mrf.mxu0
        %v554 = vadd.f32 %v302, %v553
        %v555 = vpop.f32.mrf.mxu0
        %556 = vmatprep.mubr.bf16.mxu0 0
        %557 = vmatmul.mubr.bf16.gmra.mxu0 %v428
        %v558 = vpop.f32.mrf.mxu0
        %v559 = vadd.f32 %v302, %v558
        %v560 = vpop.f32.mrf.mxu0
        %v561 = vpop.f32.mrf.mxu0
        %v562 = vadd.f32 %v302, %v561
        %v563 = vpop.f32.mrf.mxu0
        %564 = vmatprep.mubr.bf16.mxu0 0
        %565 = vmatmul.mubr.bf16.gmra.mxu0 %v431
        %v566 = vpop.f32.mrf.mxu0
        %v567 = vadd.f32 %v302, %v566
        %v568 = vpop.f32.mrf.mxu0
        %v569 = vpop.f32.mrf.mxu0
        %v570 = vadd.f32 %v302, %v569
        %v571 = vpop.f32.mrf.mxu0
        %572 = vmatprep.mubr.bf16.mxu0 0
        %573 = vmatmul.mubr.bf16.gmra.mxu0 %v434
        %v574 = vpop.f32.mrf.mxu0
        %v575 = vadd.f32 %v302, %v574
        %v576 = vpop.f32.mrf.mxu0
        %v577 = vpop.f32.mrf.mxu0
        %v578 = vadd.f32 %v302, %v577
        %v579 = vpop.f32.mrf.mxu0
        %580 = vmatprep.mubr.bf16.mxu0 0
        %581 = vmatmul.mubr.bf16.gmra.mxu0 %v437
        %v582 = vpop.f32.mrf.mxu0
        %v583 = vadd.f32 %v302, %v582
        %v584 = vpop.f32.mrf.mxu0
        %v585 = vpop.f32.mrf.mxu0
        %v586 = vadd.f32 %v302, %v585
        %v587 = vpop.f32.mrf.mxu0
        %588 = vmatprep.mubr.bf16.mxu0 0
        %589 = vmatmul.mubr.bf16.gmra.mxu0 %v440
        %v590 = vpop.f32.mrf.mxu0
        %v591 = vadd.f32 %v302, %v590
        %v592 = vpop.f32.mrf.mxu0
        %v593 = vpop.f32.mrf.mxu0
        %v594 = vadd.f32 %v302, %v593
        %v595 = vpop.f32.mrf.mxu0
        %596 = vmatprep.mubr.bf16.mxu0 0
        %597 = vmatmul.mubr.bf16.gmra.mxu0 %v443
        %v598 = vpop.f32.mrf.mxu0
        %v599 = vadd.f32 %v302, %v598
        %v600 = vpop.f32.mrf.mxu0
        %v601 = vpop.f32.mrf.mxu0
        %v602 = vadd.f32 %v302, %v601
        %v603 = vpop.f32.mrf.mxu0
        %604 = vmatprep.mubr.bf16.mxu0 0
        %605 = vmatmul.mubr.bf16.gmra.mxu0 %v446
        %v606 = vpop.f32.mrf.mxu0
        %v607 = vadd.f32 %v302, %v606
        %v608 = vpop.f32.mrf.mxu0
        %v609 = vpop.f32.mrf.mxu0
        %v610 = vadd.f32 %v302, %v609
        %v611 = vpop.f32.mrf.mxu0
        %612 = vdwg.mxu0
        %v613 = vmax.f32 %v487, 0.0
        %v614 = vmax.f32 %v490, 0.0
        %v615 = vmax.f32 %v495, 0.0
        %v616 = vmax.f32 %v498, 0.0
        %v617 = vmax.f32 %v503, 0.0
        %v618 = vmax.f32 %v506, 0.0
        %v619 = vmax.f32 %v511, 0.0
        %v620 = vmax.f32 %v514, 0.0
        %v621 = vmax.f32 %v519, 0.0
        %v622 = vmax.f32 %v522, 0.0
        %v623 = vmax.f32 %v527, 0.0
        %v624 = vmax.f32 %v530, 0.0
        %v625 = vmax.f32 %v535, 0.0
        %v626 = vmax.f32 %v538, 0.0
        %v627 = vmax.f32 %v543, 0.0
        %v628 = vmax.f32 %v546, 0.0
        %v629 = vmax.f32 %v551, 0.0
        %v630 = vmax.f32 %v554, 0.0
        %v631 = vmax.f32 %v559, 0.0
        %v632 = vmax.f32 %v562, 0.0
        %v633 = vmax.f32 %v567, 0.0
        %v634 = vmax.f32 %v570, 0.0
        %v635 = vmax.f32 %v575, 0.0
        %v636 = vmax.f32 %v578, 0.0
        %v637 = vmax.f32 %v583, 0.0
        %v638 = vmax.f32 %v586, 0.0
        %v639 = vmax.f32 %v591, 0.0
        %v640 = vmax.f32 %v594, 0.0
        %v641 = vmax.f32 %v599, 0.0
        %v642 = vmax.f32 %v602, 0.0
        %v643 = vmax.f32 %v607, 0.0
        %v644 = vmax.f32 %v610, 0.0
        %vm645 = vcmask 261120
        %v646 = vsel %vm645, %v613, 0.0
        %v647 = vsel %vm645, %v614, 0.0
        %v648 = vadd.f32 %v646, %v647
        %v649 = vsel %vm645, %v615, 0.0
        %v650 = vadd.f32 %v648, %v649
        %v651 = vsel %vm645, %v616, 0.0
        %v652 = vadd.f32 %v650, %v651
        %v653 = vsel %vm645, %v617, 0.0
        %v654 = vadd.f32 %v652, %v653
        %v655 = vsel %vm645, %v618, 0.0
        %v656 = vadd.f32 %v654, %v655
        %v657 = vsel %vm645, %v619, 0.0
        %v658 = vadd.f32 %v656, %v657
        %v659 = vsel %vm645, %v620, 0.0
        %v660 = vadd.f32 %v658, %v659
        %v661 = vsel %vm645, %v621, 0.0
        %v662 = vadd.f32 %v660, %v661
        %v663 = vsel %vm645, %v622, 0.0
        %v664 = vadd.f32 %v662, %v663
        %v665 = vsel %vm645, %v623, 0.0
        %v666 = vadd.f32 %v664, %v665
        %v667 = vsel %vm645, %v624, 0.0
        %v668 = vadd.f32 %v666, %v667
        %v669 = vsel %vm645, %v625, 0.0
        %v670 = vadd.f32 %v668, %v669
        %v671 = vsel %vm645, %v626, 0.0
        %v672 = vadd.f32 %v670, %v671
        %v673 = vsel %vm645, %v627, 0.0
        %v674 = vadd.f32 %v672, %v673
        %v675 = vsel %vm645, %v628, 0.0
        %v676 = vadd.f32 %v674, %v675
        %v677 = vsel %vm645, %v629, 0.0
        %v678 = vadd.f32 %v676, %v677
        %v679 = vsel %vm645, %v630, 0.0
        %v680 = vadd.f32 %v678, %v679
        %v681 = vsel %vm645, %v631, 0.0
        %v682 = vadd.f32 %v680, %v681
        %v683 = vsel %vm645, %v632, 0.0
        %v684 = vadd.f32 %v682, %v683
        %v685 = vsel %vm645, %v633, 0.0
        %v686 = vadd.f32 %v684, %v685
        %v687 = vsel %vm645, %v634, 0.0
        %v688 = vadd.f32 %v686, %v687
        %v689 = vsel %vm645, %v635, 0.0
        %v690 = vadd.f32 %v688, %v689
        %v691 = vsel %vm645, %v636, 0.0
        %v692 = vadd.f32 %v690, %v691
        %v693 = vsel %vm645, %v637, 0.0
        %v694 = vadd.f32 %v692, %v693
        %v695 = vsel %vm645, %v638, 0.0
        %v696 = vadd.f32 %v694, %v695
        %v697 = vsel %vm645, %v639, 0.0
        %v698 = vadd.f32 %v696, %v697
        %v699 = vsel %vm645, %v640, 0.0
        %v700 = vadd.f32 %v698, %v699
        %v701 = vsel %vm645, %v641, 0.0
        %v702 = vadd.f32 %v700, %v701
        %v703 = vsel %vm645, %v642, 0.0
        %v704 = vadd.f32 %v702, %v703
        %v705 = vsel %vm645, %v643, 0.0
        %v706 = vadd.f32 %v704, %v705
        %v707 = vsel %vm645, %v644, 0.0
        %v708 = vadd.f32 %v706, %v707
        %v709 = vrot.slane %v708, 4
        %v710 = vadd.f32 %v708, %v709
        %v711 = vrot.slane %v710, 2
        %v712 = vadd.f32 %v710, %v711
        %v713 = vrot.slane %v712, 1
        %v714 = vadd.f32 %v712, %v713
        %v715 = vmul.f32 %v714, 0.00390625
        %vm716 = vcmask 253952
        %717 = vst.msk [vmem:[%s245] sm:$0x1] %vm716, %v715
        %v718 = vld [vmem:[%s3] sm:$0x1]
        %v719 = vmul.f32 %v715, %v718
        %v720 = vsel %vm716, %v719, 0.0
        %721 = vadd.xlane.f32.xlu0 %v720
        %v722 = vpop.xlane.xlu0 %721
        %s723 = sld [smem:[#allocation2]]
        %v724 = vstv %s723
        %v725 = vadd.f32 %v722, %v724
        %vm726 = vcmask 0
        %727 = vst.msk [vmem:[%s258] sm:$0x1] %vm726, %v725
        %s728 = sand.u32 %s140, 1
        %s729 = scalar_lea.sflag [#allocation4], %s728
        %s730 = sand.u32 %s140, 1
        %s731 = scalar_lea.vmem [#allocation3], %s730
        %p732 = scmp.lt.s32.totalorder %s22, 1
        %s733 = scalar_select %p732, %s22, 1
        %s734 = scalar_lea.vmem %s6, %s733
        // Predicated region
        $region41: #{get_model_forward.1} parent=39 // pred_check
          %p735 = pneg %p150
        $region42: #{get_model_forward.1} parent=39 // pred_check_branch
          %737 = sbr.rel (%p735) target = $region44
        $region43: #{get_model_forward.1} parent=39 // pred_region
          %s739 = ssub.s32 16, 16
          %740 = vsyncadd %s729, %s739
          %s741 = smul.addr %s22, 16
          %s742 = scalar_lea.hbm %s5, %s741
          %s744 = sshll.u32 %s731, 4
          %s745 = int_to_ptr.vmem [resolvable:$true] %s744
          %747 = dma.vmem_to_hbm [thread:$0]  %s745, 16, %s742, %s729
        $region44: #{get_model_forward.1} parent=39 // pred_fallthru
          _
        // Predicated region
        $region45: #{get_model_forward.1} parent=39 // pred_check
          %p748 = pneg %p176
        $region46: #{get_model_forward.1} parent=39 // pred_check_branch
          %750 = sbr.rel (%p748) target = $region48
        $region47: #{get_model_forward.1} parent=39 // pred_region
          _
        $region48: #{get_model_forward.1} parent=39 // pred_fallthru
          _
      $region40: #{get_model_forward.1} parent=5 // pred_fallthru
        _
      %p751 = scmp.le.s32.totalorder 2, %s17
      // Predicated region
      $region49: #{get_model_forward.1} parent=5 // pred_check
        %p752 = pneg %p751
      $region50: #{get_model_forward.1} parent=5 // pred_check_branch
        %754 = sbr.rel (%p752) target = $region52
      $region51: #{get_model_forward.1} parent=5 // pred_region
        %s755 = ssub.s32 %s17, 2
        // Predicated region
        $region53: #{get_model_forward.1} parent=51 // pred_check
          %p756 = pneg %p156
        $region54: #{get_model_forward.1} parent=51 // pred_check_branch
          %758 = sbr.rel (%p756) target = $region56
        $region55: #{get_model_forward.1} parent=51 // pred_region
          %s759 = sand.u32 %s141, 1
          %s760 = scalar_lea.sflag [#allocation4], %s759
          %s761 = sand.u32 %s141, 1
          %s762 = scalar_lea.vmem [#allocation3], %s761
          %763 = dma.done %s760, 16
        $region56: #{get_model_forward.1} parent=51 // pred_fallthru
          _
        // Predicated region
        $region57: #{get_model_forward.1} parent=51 // pred_check
          %p764 = pneg %p182
        $region58: #{get_model_forward.1} parent=51 // pred_check_branch
          %766 = sbr.rel (%p764) target = $region60
        $region59: #{get_model_forward.1} parent=51 // pred_region
          %p767 = scmp.lt.s32.totalorder %s23, 1
          %s768 = scalar_select %p767, %s23, 1
          %s769 = scalar_lea.vmem %s6, %s768
        $region60: #{get_model_forward.1} parent=51 // pred_fallthru
          _
      $region52: #{get_model_forward.1} parent=5 // pred_fallthru
        _
    $region6: #{get_model_forward.1} parent=1 // loop_footer
      %s21 = sadd.s32 1, %s17
    $region7: #{get_model_forward.1} parent=1 // loop_footer_branch
      %16 = sbr.rel target = $region3
    $region8: #{get_model_forward.1} parent=1 // loop_exit
      _
    %770 = vsyncpa [#allocation4], 1
    %s771 = scalar_lea.sflag [#allocation4], 1
    %772 = vsyncpa %s771, 1

</llo_original>
